<compile_context>
chip_gen: v7x
topology: tpu7x:2x2x1
jax: 0.10.0
libtpu: 0.0.40
codegen_flags: <defaults>
</compile_context>

<pallas_src>
import functools

import jax
import jax.numpy as jnp
from jax.experimental import pallas as pl
from jax.experimental.pallas import tpu as pltpu


def _round_up(x, m):
    return ((x + m - 1) // m) * m


def _qnet_kernel(s_ref, a_ref, w1_ref, b1_ref, w2_ref, b2_ref, w3t_ref,
                 b3_ref, o_ref, x_scr, *, S, A):
    # Fold torch.cat into the kernel: pack state|action into one (TB, S+A)
    # f32 VMEM scratch (two lane-masked stores) so layer 1 is a single
    # K=S+A MXU dot instead of two (MXU push count is independent of K).
    x_scr[:, :S] = s_ref[...].astype(x_scr.dtype)
    x_scr[:, S:] = a_ref[...].astype(x_scr.dtype)

    cdt = w1_ref.dtype                       # compute dtype (bf16 by default)
    x = x_scr[...].astype(cdt)               # in-kernel cast (no XLA cast op)

    # Layer 1: (TB, S+A) @ (S+A, H1p); f32 accumulation, f32 bias + ReLU.
    h1 = jnp.dot(x, w1_ref[...], preferred_element_type=jnp.float32) + b1_ref[...]
    h1 = jnp.maximum(h1, 0.0)

    # Layer 2.
    h2 = jnp.dot(h1.astype(cdt), w2_ref[...],
                 preferred_element_type=jnp.float32) + b2_ref[...]
    h2 = jnp.maximum(h2, 0.0)
    # TODO(synk): on v5e, if vld/vst slots bind at large TB, sub-chunk the
    # batch tile with an unrolled fori_loop so h1/h2 stay in vregs.

    # Output layer (N=1): VPU multiply + lane reduction (no MXU push);
    # scalar bias comes from SMEM.
    out = jnp.sum(h2 * w3t_ref[...], axis=-1, keepdims=True) + b3_ref[0]
    # TODO(synk): (TB,1) store is lane-masked; only densify the output slab if
    # stores ever show near the critical path (secondary to MXU pushes today).
    o_ref[...] = out.astype(o_ref.dtype)


def init_params(key, num_states, num_actions, hidden_units_1, hidden_units_2):
    """PyTorch-Linear-style init: U(-1/sqrt(fan_in), 1/sqrt(fan_in)).
    Weights are [in_features, out_features]; biases are [1, out_features]."""
    def linear(k, fan_in, fan_out):
        kw, kb = jax.random.split(k)
        bound = 1.0 / jnp.sqrt(jnp.float32(fan_in))
        w = jax.random.uniform(kw, (fan_in, fan_out), jnp.float32, -bound, bound)
        b = jax.random.uniform(kb, (1, fan_out), jnp.float32, -bound, bound)
        return w, b

    k1, k2, k3 = jax.random.split(key, 3)
    w1, b1 = linear(k1, num_states + num_actions, hidden_units_1)
    w2, b2 = linear(k2, hidden_units_1, hidden_units_2)
    w3, b3 = linear(k3, hidden_units_2, 1)
    return (w1, b1, w2, b2, w3, b3)


def prepare_params(params, *, compute_dtype=jnp.bfloat16, lane=128):
    """One-time prep: zero-pad hidden widths to a multiple of 128 lanes
    (exact: ReLU(0)=0 and zero rows/cols contribute nothing), transpose W3 to
    a row vector for the VPU reduce, cast MXU weights to compute_dtype
    (biases and W3 stay f32), and flatten b3 to a 1-D SMEM scalar."""
    w1, b1, w2, b2, w3, b3 = params
    H1, H2 = w1.shape[1], w2.shape[1]
    H1p, H2p = _round_up(H1, lane), _round_up(H2, lane)

    w1p = jnp.pad(w1, ((0, 0), (0, H1p - H1))).astype(compute_dtype)       # [S+A, H1p]
    b1p = jnp.pad(b1, ((0, 0), (0, H1p - H1))).astype(jnp.float32)          # [1, H1p]
    w2p = jnp.pad(w2, ((0, H1p - H1), (0, H2p - H2))).astype(compute_dtype) # [H1p, H2p]
    b2p = jnp.pad(b2, ((0, 0), (0, H2p - H2))).astype(jnp.float32)          # [1, H2p]
    w3t = jnp.pad(w3, ((0, H2p - H2), (0, 0))).T.astype(jnp.float32)        # [1, H2p]
    b3f = b3.reshape(-1).astype(jnp.float32)                                # [1] (SMEM)
    return (w1p, b1p, w2p, b2p, w3t, b3f)


def q_network_forward(state, action, prepared, *, block_batch=4096):
    """state: [B, num_states], action: [B, num_actions] -> [B, 1] float32."""
    w1, b1, w2, b2, w3t, b3 = prepared
    B, S = state.shape
    A = action.shape[1]
    K = S + A
    H1p, H2p = w2.shape

    # Adaptive batch tile: ~block_batch rows, multiple of 8 sublanes, sized so
    # a ragged B (e.g. 513) doesn't nearly double padded work. At TB=4096 the
    # double-buffered input tiles + scratch + resident weights use < 2 MiB of
    # VMEM - far under every generation's limit - so no cap is needed; the
    # large tile amortizes the ~0.35 us per-grid-step overhead.
    n_tiles = max(1, -(-B // block_batch))
    TB = _round_up(-(-B // n_tiles), 8)
    Bp = TB * n_tiles
    if Bp != B:
        state = jnp.pad(state, ((0, Bp - B), (0, 0)))
        action = jnp.pad(action, ((0, Bp - B), (0, 0)))

    operands = (state, action, w1, b1, w2, b2, w3t, b3)
    # Advisory only: flops use the lane-padded H1p/H2p, overstating true math.
    flops = 2 * Bp * (K * H1p + H1p * H2p + H2p)
    bytes_accessed = sum(int(a.size) * a.dtype.itemsize for a in operands) + Bp * 4

    kernel = functools.partial(_qnet_kernel, S=S, A=A)
    out = pl.pallas_call(
        kernel,
        out_shape=jax.ShapeDtypeStruct((Bp, 1), jnp.float32),
        grid=(n_tiles,),
        in_specs=[
            pl.BlockSpec((TB, S), lambda i: (i, 0)),            # state tile
            pl.BlockSpec((TB, A), lambda i: (i, 0)),            # action tile
            pl.BlockSpec((K, H1p), lambda i: (0, 0)),            # weights: VMEM-resident
            pl.BlockSpec((1, H1p), lambda i: (0, 0)),
            pl.BlockSpec((H1p, H2p), lambda i: (0, 0)),
            pl.BlockSpec((1, H2p), lambda i: (0, 0)),
            pl.BlockSpec((1, H2p), lambda i: (0, 0)),
            pl.BlockSpec(memory_space=pltpu.MemorySpace.SMEM),   # b3 scalar
        ],
        out_specs=pl.BlockSpec((TB, 1), lambda i: (i, 0)),
        scratch_shapes=[pltpu.VMEM((TB, K), jnp.float32)],
        # TODO(synk): on v7x, if xprof shows the batch grid on a single
        # TensorCore, switch this axis to pltpu.CORE_PARALLEL (or pl.core_map).
        compiler_params=pltpu.CompilerParams(
            dimension_semantics=("parallel",)),
        cost_estimate=pl.CostEstimate(
            flops=flops, transcendentals=0, bytes_accessed=bytes_accessed),
    )(*operands)
    return out[:B]


if __name__ == "__main__":
    num_states = 12
    num_actions = 4
    hidden_units_1 = 32
    hidden_units_2 = 32
    batch = 8

    root = jax.random.PRNGKey(0)
    k_params, k_state, k_action = jax.random.split(root, 3)

    params = init_params(k_params, num_states, num_actions,
                         hidden_units_1, hidden_units_2)
    state = jax.random.normal(k_state, (batch, num_states), jnp.float32)
    action = jax.random.normal(k_action, (batch, num_actions), jnp.float32)

    # Pure-JAX reference on the original, unpadded params.
    w1, b1, w2, b2, w3, b3 = params
    x = jnp.concatenate([state, action], axis=1)
    ref = jnp.maximum(x @ w1 + b1, 0.0)
    ref = jnp.maximum(ref @ w2 + b2, 0.0)
    ref = ref @ w3 + b3

    # Default bf16 compute path (f32 accumulation / bias / ReLU inside).
    out_bf16 = q_network_forward(state, action, prepare_params(params))
    out_bf16 = jax.block_until_ready(out_bf16)
    assert out_bf16.shape == (batch, 1)
    assert jnp.allclose(out_bf16, ref, atol=5e-2, rtol=5e-2), "bf16 path mismatch"

    # Strict-tolerance f32 path.
    out_f32 = q_network_forward(
        state, action, prepare_params(params, compute_dtype=jnp.float32))
    out_f32 = jax.block_until_ready(out_f32)
    assert out_f32.shape == (batch, 1)
    assert jnp.allclose(out_f32, ref, atol=1e-5, rtol=1e-5), "f32 path mismatch"

    print("KERNEL_OK")
</pallas_src>

<mosaic_0001>
module attributes {stable_mosaic.version = 11 : i64} {
  func.func @_qnet_kernel(%arg0: i32, %arg1: memref<8x12xf32, #tpu.memory_space<vmem>>, %arg2: memref<8x4xf32, #tpu.memory_space<vmem>>, %arg3: memref<16x128xbf16, #tpu.memory_space<vmem>>, %arg4: memref<1x128xf32, #tpu.memory_space<vmem>>, %arg5: memref<128x128xbf16, #tpu.memory_space<vmem>>, %arg6: memref<1x128xf32, #tpu.memory_space<vmem>>, %arg7: memref<1x128xf32, #tpu.memory_space<vmem>>, %arg8: memref<1xf32, #tpu.memory_space<smem>>, %arg9: memref<8x1xf32, #tpu.memory_space<vmem>>, %arg10: memref<8x16xf32, #tpu.memory_space<vmem>>) attributes {dimension_semantics = [#tpu.dimension_semantics<parallel>], iteration_bounds = array<i64: 1>, scalar_prefetch = 0 : i64, scratch_operands = 1 : i64, tpu.core_type = #tpu.core_type<tc>, window_params = [{transform_indices = @transform_0, window_bounds = array<i64: 8, 12>}, {transform_indices = @transform_1, window_bounds = array<i64: 8, 4>}, {pipeline_mode = #tpu.pipeline_mode<synchronous>, transform_indices = @transform_2, window_bounds = array<i64: 16, 128>}, {pipeline_mode = #tpu.pipeline_mode<synchronous>, transform_indices = @transform_3, window_bounds = array<i64: 1, 128>}, {pipeline_mode = #tpu.pipeline_mode<synchronous>, transform_indices = @transform_4, window_bounds = array<i64: 128, 128>}, {pipeline_mode = #tpu.pipeline_mode<synchronous>, transform_indices = @transform_5, window_bounds = array<i64: 1, 128>}, {pipeline_mode = #tpu.pipeline_mode<synchronous>, transform_indices = @transform_6, window_bounds = array<i64: 1, 128>}, {transform_indices = @transform_7, window_bounds = array<i64: 1>}, {transform_indices = @transform_8, window_bounds = array<i64: 8, 1>}]} {
    %c0 = arith.constant 0 : index
    %c0_0 = arith.constant 0 : index
    %0 = vector.load %arg1[%c0, %c0_0] : memref<8x12xf32, #tpu.memory_space<vmem>>, vector<8x12xf32>
    %c0_1 = arith.constant 0 : index
    %c0_2 = arith.constant 0 : index
    %1 = vector.load %arg10[%c0_1, %c0_2] : memref<8x16xf32, #tpu.memory_space<vmem>>, vector<8x12xf32>
    tpu.vector_store %arg10[%c0_1, %c0_2], %0 {strides = array<i32>} : memref<8x16xf32, #tpu.memory_space<vmem>>, vector<8x12xf32>,
    %c0_3 = arith.constant 0 : index
    %c0_4 = arith.constant 0 : index
    %2 = vector.load %arg2[%c0_3, %c0_4] : memref<8x4xf32, #tpu.memory_space<vmem>>, vector<8x4xf32>
    %c0_5 = arith.constant 0 : index
    %c12 = arith.constant 12 : index
    %3 = vector.load %arg10[%c0_5, %c12] : memref<8x16xf32, #tpu.memory_space<vmem>>, vector<8x4xf32>
    tpu.vector_store %arg10[%c0_5, %c12], %2 {strides = array<i32>} : memref<8x16xf32, #tpu.memory_space<vmem>>, vector<8x4xf32>,
    %c0_6 = arith.constant 0 : index
    %c0_7 = arith.constant 0 : index
    %4 = vector.load %arg10[%c0_6, %c0_7] : memref<8x16xf32, #tpu.memory_space<vmem>>, vector<8x16xf32>
    %5 = arith.truncf %4 : vector<8x16xf32> to vector<8x16xbf16>
    %c0_8 = arith.constant 0 : index
    %c0_9 = arith.constant 0 : index
    %6 = vector.load %arg3[%c0_8, %c0_9] : memref<16x128xbf16, #tpu.memory_space<vmem>>, vector<16x128xbf16>
    %cst = arith.constant dense<0.000000e+00> : vector<8x128xf32>
    %7 = tpu.matmul %5, %6, %cst {dimension_numbers = #tpu.dot_dimension_numbers<[1], [0], [0], [1], [0, 0, 1, 1], [], []>} : vector<8x16xbf16>, vector<16x128xbf16>, vector<8x128xf32> -> vector<8x128xf32>
    %c0_10 = arith.constant 0 : index
    %c0_11 = arith.constant 0 : index
    %8 = vector.load %arg4[%c0_10, %c0_11] : memref<1x128xf32, #tpu.memory_space<vmem>>, vector<1x128xf32>
    %9 = vector.broadcast %8 : vector<1x128xf32> to vector<8x128xf32>
    %10 = arith.addf %7, %9 : vector<8x128xf32>
    %cst_12 = arith.constant 0.000000e+00 : f32
    %11 = vector.broadcast %cst_12 : f32 to vector<8x128xf32>
    %12 = arith.maximumf %10, %11 : vector<8x128xf32>
    %13 = arith.truncf %12 : vector<8x128xf32> to vector<8x128xbf16>
    %c0_13 = arith.constant 0 : index
    %c0_14 = arith.constant 0 : index
    %14 = vector.load %arg5[%c0_13, %c0_14] : memref<128x128xbf16, #tpu.memory_space<vmem>>, vector<128x128xbf16>
    %cst_15 = arith.constant dense<0.000000e+00> : vector<8x128xf32>
    %15 = tpu.matmul %13, %14, %cst_15 {dimension_numbers = #tpu.dot_dimension_numbers<[1], [0], [0], [1], [0, 0, 1, 1], [], []>} : vector<8x128xbf16>, vector<128x128xbf16>, vector<8x128xf32> -> vector<8x128xf32>
    %c0_16 = arith.constant 0 : index
    %c0_17 = arith.constant 0 : index
    %16 = vector.load %arg6[%c0_16, %c0_17] : memref<1x128xf32, #tpu.memory_space<vmem>>, vector<1x128xf32>
    %17 = vector.broadcast %16 : vector<1x128xf32> to vector<8x128xf32>
    %18 = arith.addf %15, %17 : vector<8x128xf32>
    %cst_18 = arith.constant 0.000000e+00 : f32
    %19 = vector.broadcast %cst_18 : f32 to vector<8x128xf32>
    %20 = arith.maximumf %18, %19 : vector<8x128xf32>
    %c0_19 = arith.constant 0 : index
    %c0_20 = arith.constant 0 : index
    %21 = vector.load %arg7[%c0_19, %c0_20] : memref<1x128xf32, #tpu.memory_space<vmem>>, vector<1x128xf32>
    %22 = vector.broadcast %21 : vector<1x128xf32> to vector<8x128xf32>
    %23 = arith.mulf %20, %22 : vector<8x128xf32>
    %cst_21 = arith.constant dense<0.000000e+00> : vector<8xf32>
    %24 = vector.multi_reduction <add>, %23, %cst_21 [1] : vector<8x128xf32> to vector<8xf32>
    %25 = vector.shape_cast %24 : vector<8xf32> to vector<8x1xf32>
    %c0_22 = arith.constant 0 : index
    %26 = memref.load %arg8[%c0_22] : memref<1xf32, #tpu.memory_space<smem>>
    %27 = vector.broadcast %26 : f32 to vector<8x1xf32>
    %28 = arith.addf %25, %27 : vector<8x1xf32>
    %c0_23 = arith.constant 0 : index
    %c0_24 = arith.constant 0 : index
    %29 = vector.load %arg9[%c0_23, %c0_24] : memref<8x1xf32, #tpu.memory_space<vmem>>, vector<8x1xf32>
    tpu.vector_store %arg9[%c0_23, %c0_24], %28 {strides = array<i32>} : memref<8x1xf32, #tpu.memory_space<vmem>>, vector<8x1xf32>,
    return
  }
  func.func @transform_0(%arg0: i32) -> (i32, i32) {
    %c0_i32 = arith.constant 0 : i32
    %c0_i32_0 = arith.constant 0 : i32
    return %arg0, %c0_i32 : i32, i32
  }
  func.func @transform_1(%arg0: i32) -> (i32, i32) {
    %c0_i32 = arith.constant 0 : i32
    %c0_i32_0 = arith.constant 0 : i32
    return %arg0, %c0_i32 : i32, i32
  }
  func.func @transform_2(%arg0: i32) -> (i32, i32) {
    %c0_i32 = arith.constant 0 : i32
    %c0_i32_0 = arith.constant 0 : i32
    %c0_i32_1 = arith.constant 0 : i32
    return %c0_i32, %c0_i32_0 : i32, i32
  }
  func.func @transform_3(%arg0: i32) -> (i32, i32) {
    %c0_i32 = arith.constant 0 : i32
    %c0_i32_0 = arith.constant 0 : i32
    %c0_i32_1 = arith.constant 0 : i32
    return %c0_i32, %c0_i32_0 : i32, i32
  }
  func.func @transform_4(%arg0: i32) -> (i32, i32) {
    %c0_i32 = arith.constant 0 : i32
    %c0_i32_0 = arith.constant 0 : i32
    %c0_i32_1 = arith.constant 0 : i32
    return %c0_i32, %c0_i32_0 : i32, i32
  }
  func.func @transform_5(%arg0: i32) -> (i32, i32) {
    %c0_i32 = arith.constant 0 : i32
    %c0_i32_0 = arith.constant 0 : i32
    %c0_i32_1 = arith.constant 0 : i32
    return %c0_i32, %c0_i32_0 : i32, i32
  }
  func.func @transform_6(%arg0: i32) -> (i32, i32) {
    %c0_i32 = arith.constant 0 : i32
    %c0_i32_0 = arith.constant 0 : i32
    %c0_i32_1 = arith.constant 0 : i32
    return %c0_i32, %c0_i32_0 : i32, i32
  }
  func.func @transform_7(%arg0: i32) -> i32 {
    %c0_i32 = arith.constant 0 : i32
    %c0_i32_0 = arith.constant 0 : i32
    return %c0_i32 : i32
  }
  func.func @transform_8(%arg0: i32) -> (i32, i32) {
    %c0_i32 = arith.constant 0 : i32
    %c0_i32_0 = arith.constant 0 : i32
    return %arg0, %c0_i32 : i32, i32
  }
}

</mosaic_0001>

<llo_original>
// kernel: tpu_custom_call.1
$region0: #{tpu_custom_call.1}
  #allocation0 [shape = 'u32[]', space=smem, size = 0x4, offset = 0x4, fixed_abs, tag = 'smem constant byte address 0x4 - core index']
  #allocation1 [shape = 'u32[144,128]{1,0:T(1,128)}', space=vmem, size = 0x12000, scoped, tag = 'internal scratch']
  #allocation2 [shape = 'f32[8,16]{1,0:T(8,128)}', space=vmem, size = 0x1000, scoped, tag = 'scratch operand']
  #allocation3 [shape = 'f32[1]{0:T(128)S(6)}', space=smem, size = 0x200, scoped, tag = 'scoped memory for tpu_custom_call.1']
  %s0 = inlined_call_operand.vmem [shape: f32[8,12], index: 0, kind: input, shape index: {}]
  %s1 = inlined_call_operand.vmem [shape: f32[8,4], index: 1, kind: input, shape index: {}]
  %s2 = inlined_call_operand.vmem [shape: bf16[16,128], index: 2, kind: input, shape index: {}]
  %s3 = inlined_call_operand.vmem [shape: f32[1,128], index: 3, kind: input, shape index: {}]
  %s4 = inlined_call_operand.hbm [shape: bf16[128,128], index: 4, kind: input, shape index: {}]
  %s5 = inlined_call_operand.vmem [shape: f32[1,128], index: 5, kind: input, shape index: {}]
  %s6 = inlined_call_operand.vmem [shape: f32[1,128], index: 6, kind: input, shape index: {}]
  %s7 = inlined_call_operand.<no memory space> [shape: f32[1], index: 7, kind: input, shape index: {}]
  %s8 = inlined_call_operand.vmem [shape: f32[8,1], index: 8, kind: output, shape index: {}]
  %s9 = sld [smem:[#allocation0]]
  $region46: #{tpu_custom_call.1} parent=0
    _
  %s11 = ssub.s32 1, %s9
  %s12 = scalar_select 0, %s11, %s9
  %13 = sst [smem:[#allocation3]] %s7
  $region1: #{tpu_custom_call.1} parent=0
    #allocation4 [shape = 'u8[32768]{0}', space=vmem, size = 0x8000, scoped, tag = 'input window, operand 4, single buffered']
    #allocation5 [shape = 's32[1]{0}', space=sflag, size = 0x4, scoped, tag = 'scoped memory for tpu_custom_call.1']
    %14 = vsyncpa [#allocation5], 0
    // Predicated region
    $region2: #{tpu_custom_call.1} parent=1 // pred_check
      _
    $region3: #{tpu_custom_call.1} parent=1 // pred_check_branch
      %16 = sbr.rel (0) target = $region5
    $region4: #{tpu_custom_call.1} parent=1 // pred_region
      _
    $region5: #{tpu_custom_call.1} parent=1 // pred_fallthru
      _
    // Predicated region
    $region6: #{tpu_custom_call.1} parent=1 // pred_check
      _
    $region7: #{tpu_custom_call.1} parent=1 // pred_check_branch
      %18 = sbr.rel (0) target = $region9
    $region8: #{tpu_custom_call.1} parent=1 // pred_region
      _
    $region9: #{tpu_custom_call.1} parent=1 // pred_fallthru
      _
    // Predicated region
    $region10: #{tpu_custom_call.1} parent=1 // pred_check
      _
    $region11: #{tpu_custom_call.1} parent=1 // pred_check_branch
      %20 = sbr.rel (0) target = $region13
    $region12: #{tpu_custom_call.1} parent=1 // pred_region
      _
    $region13: #{tpu_custom_call.1} parent=1 // pred_fallthru
      _
    // Predicated region
    $region14: #{tpu_custom_call.1} parent=1 // pred_check
      _
    $region15: #{tpu_custom_call.1} parent=1 // pred_check_branch
      %22 = sbr.rel (0) target = $region17
    $region16: #{tpu_custom_call.1} parent=1 // pred_region
      _
    $region17: #{tpu_custom_call.1} parent=1 // pred_fallthru
      _
    // Predicated region
    $region18: #{tpu_custom_call.1} parent=1 // pred_check
      _
    $region19: #{tpu_custom_call.1} parent=1 // pred_check_branch
      %24 = sbr.rel (0) target = $region21
    $region20: #{tpu_custom_call.1} parent=1 // pred_region
      %s26 = ssub.s32 1024, 1024
      %27 = vsyncadd [#allocation5], %s26
      %s28 = sshll.u32 [#allocation4], 4
      %s29 = int_to_ptr.vmem [resolvable:$true] %s28
      %34 = dma.hbm_to_vmem [thread:$0]  %s4, 1024, %s29, [#allocation5], 64, 64, 4
    $region21: #{tpu_custom_call.1} parent=1 // pred_fallthru
      _
    // Predicated region
    $region22: #{tpu_custom_call.1} parent=1 // pred_check
      _
    $region23: #{tpu_custom_call.1} parent=1 // pred_check_branch
      %36 = sbr.rel (0) target = $region25
    $region24: #{tpu_custom_call.1} parent=1 // pred_region
      _
    $region25: #{tpu_custom_call.1} parent=1 // pred_fallthru
      _
    // Predicated region
    $region26: #{tpu_custom_call.1} parent=1 // pred_check
      _
    $region27: #{tpu_custom_call.1} parent=1 // pred_check_branch
      %38 = sbr.rel (0) target = $region29
    $region28: #{tpu_custom_call.1} parent=1 // pred_region
      _
    $region29: #{tpu_custom_call.1} parent=1 // pred_fallthru
      _
    // Predicated region
    $region30: #{tpu_custom_call.1} parent=1 // pred_check
      _
    $region31: #{tpu_custom_call.1} parent=1 // pred_check_branch
      %40 = sbr.rel (0) target = $region33
    $region32: #{tpu_custom_call.1} parent=1 // pred_region
      _
    $region33: #{tpu_custom_call.1} parent=1 // pred_fallthru
      _
    // Predicated region
    $region34: #{tpu_custom_call.1} parent=1 // pred_check
      _
    $region35: #{tpu_custom_call.1} parent=1 // pred_check_branch
      %42 = sbr.rel (0) target = $region37
    $region36: #{tpu_custom_call.1} parent=1 // pred_region
      %43 = dma.done [#allocation5], 1024
    $region37: #{tpu_custom_call.1} parent=1 // pred_fallthru
      _
    %v45 = vld [vmem:[%s0] sm:$0xff]
    %vm46 = vcmask 97280
    %47 = vst.msk [vmem:[#allocation2] sm:$0xff] %vm46, %v45
    %v48 = vld [vmem:[%s1] sm:$0xff]
    %50 = vrot.lane.b32.xlu0 %v48, 12
    %v51 = vpop.permute.xlu0 %50
    %vm53 = vcmask 130144
    %54 = vst.msk [vmem:[#allocation2] sm:$0xff] %vm53, %v51
    %v55 = vld [vmem:[#allocation2] sm:$0xff]
    %v56 = vpack.c.bf16 %v55, %v55
    %v57 = vld [vmem:[%s2] sm:$0xf]
    %v58 = vld [vmem:[%s2 + $0x4] sm:$0xf]
    %v59 = vld [vmem:[%s3] sm:$0x1]
    %v61 = vlaneseq
    %v62 = vshrl.u32 %v61, 7
    %v63 = vsub.s32 0, %v62
    %v64 = vrot.slane %v59, %v63
    %v68 = vunpack.c.l.b16 %v57
    %v69 = vunpack.c.l.b16 %v58
    %v70 = vpack.c.b16 %v69, %v68
    %vm72 = vcmask 130048
    %v74 = vsel %vm72, %v56, 0
    %76 = vmatprep.subr.bf16.mxu0 0
    %77 = vmatpush1.bf16.msra.mxu0 %v70
    %78 = vmatprep.subr.bf16.mxu0 0
    %79 = vmatpush1.bf16.msra.mxu0 0
    %80 = vmatprep.subr.bf16.mxu0 0
    %81 = vmatpush1.bf16.msra.mxu0 0
    %82 = vmatprep.subr.bf16.mxu0 0
    %83 = vmatpush1.bf16.msra.mxu0 0
    %84 = vmatprep.subr.bf16.mxu0 0
    %85 = vmatpush1.bf16.msra.mxu0 0
    %86 = vmatprep.subr.bf16.mxu0 0
    %87 = vmatpush1.bf16.msra.mxu0 0
    %88 = vmatprep.subr.bf16.mxu0 0
    %89 = vmatpush1.bf16.msra.mxu0 0
    %90 = vmatprep.subr.bf16.mxu0 0
    %91 = vmatpush1.bf16.msra.mxu0 0
    %92 = vmatprep.subr.bf16.mxu0 0
    %93 = vmatpush1.bf16.msra.mxu0 0
    %94 = vmatprep.subr.bf16.mxu0 0
    %95 = vmatpush1.bf16.msra.mxu0 0
    %96 = vmatprep.subr.bf16.mxu0 0
    %97 = vmatpush1.bf16.msra.mxu0 0
    %98 = vmatprep.subr.bf16.mxu0 0
    %99 = vmatpush1.bf16.msra.mxu0 0
    %100 = vmatprep.subr.bf16.mxu0 0
    %101 = vmatpush1.bf16.msra.mxu0 0
    %102 = vmatprep.subr.bf16.mxu0 0
    %103 = vmatpush1.bf16.msra.mxu0 0
    %104 = vmatprep.subr.bf16.mxu0 0
    %105 = vmatpush1.bf16.msra.mxu0 0
    %106 = vmatprep.subr.bf16.mxu0 0
    %107 = vmatpush1.bf16.msra.mxu0 0
    %108 = vmatprep.mubr.bf16.mxu0 0
    %109 = vmatmul.mubr.bf16.gmra.mrb[0].mxu0 %v74
    %v110 = vpop.f32.mrb[0].mxu0
    %v111 = vadd.f32 %v64, %v110
    %v112 = vpop.f32.mrb[0].mxu0
    %v113 = vpop.f32.mrb[0].mxu0
    %v114 = vpop.f32.mrb[0].mxu0
    %115 = vdwg.mxu0
    %v116 = vmax.f32 %v111, 0.0
    %v117 = vpack.c.bf16 %v116, %v116
    %v118 = vld [vmem:[#allocation4] sm:$0xf]
    %v119 = vld [vmem:[#allocation4 + $0x4] sm:$0xf]
    %v120 = vld [vmem:[#allocation4 + $0x8] sm:$0xf]
    %v121 = vld [vmem:[#allocation4 + $0xc] sm:$0xf]
    %v122 = vld [vmem:[#allocation4 + $0x10] sm:$0xf]
    %v123 = vld [vmem:[#allocation4 + $0x14] sm:$0xf]
    %v124 = vld [vmem:[#allocation4 + $0x18] sm:$0xf]
    %v125 = vld [vmem:[#allocation4 + $0x1c] sm:$0xf]
    %v126 = vld [vmem:[#allocation4 + $0x20] sm:$0xf]
    %v127 = vld [vmem:[#allocation4 + $0x24] sm:$0xf]
    %v128 = vld [vmem:[#allocation4 + $0x28] sm:$0xf]
    %v129 = vld [vmem:[#allocation4 + $0x2c] sm:$0xf]
    %v130 = vld [vmem:[#allocation4 + $0x30] sm:$0xf]
    %v131 = vld [vmem:[#allocation4 + $0x34] sm:$0xf]
    %v132 = vld [vmem:[#allocation4 + $0x38] sm:$0xf]
    %v133 = vld [vmem:[#allocation4 + $0x3c] sm:$0xf]
    %v134 = vld [vmem:[%s5] sm:$0x1]
    %v136 = vlaneseq
    %v137 = vshrl.u32 %v136, 7
    %v138 = vsub.s32 0, %v137
    %v139 = vrot.slane %v134, %v138
    %v157 = vunpack.c.l.b16 %v118
    %v158 = vunpack.c.l.b16 %v119
    %v159 = vunpack.c.l.b16 %v120
    %v160 = vunpack.c.l.b16 %v121
    %v161 = vunpack.c.l.b16 %v122
    %v162 = vunpack.c.l.b16 %v123
    %v163 = vunpack.c.l.b16 %v124
    %v164 = vunpack.c.l.b16 %v125
    %v165 = vunpack.c.l.b16 %v126
    %v166 = vunpack.c.l.b16 %v127
    %v167 = vunpack.c.l.b16 %v128
    %v168 = vunpack.c.l.b16 %v129
    %v169 = vunpack.c.l.b16 %v130
    %v170 = vunpack.c.l.b16 %v131
    %v171 = vunpack.c.l.b16 %v132
    %v172 = vunpack.c.l.b16 %v133
    %v173 = vpack.c.b16 %v158, %v157
    %v174 = vpack.c.b16 %v160, %v159
    %v175 = vpack.c.b16 %v162, %v161
    %v176 = vpack.c.b16 %v164, %v163
    %v177 = vpack.c.b16 %v166, %v165
    %v178 = vpack.c.b16 %v168, %v167
    %v179 = vpack.c.b16 %v170, %v169
    %v180 = vpack.c.b16 %v172, %v171
    %189 = vmatprep.subr.bf16.mxu0 0
    %190 = vmatpush1.bf16.msra.mxu0 %v173
    %191 = vmatprep.subr.bf16.mxu0 0
    %192 = vmatpush1.bf16.msra.mxu0 %v174
    %193 = vmatprep.subr.bf16.mxu0 0
    %194 = vmatpush1.bf16.msra.mxu0 %v175
    %195 = vmatprep.subr.bf16.mxu0 0
    %196 = vmatpush1.bf16.msra.mxu0 %v176
    %197 = vmatprep.subr.bf16.mxu0 0
    %198 = vmatpush1.bf16.msra.mxu0 %v177
    %199 = vmatprep.subr.bf16.mxu0 0
    %200 = vmatpush1.bf16.msra.mxu0 %v178
    %201 = vmatprep.subr.bf16.mxu0 0
    %202 = vmatpush1.bf16.msra.mxu0 %v179
    %203 = vmatprep.subr.bf16.mxu0 0
    %204 = vmatpush1.bf16.msra.mxu0 %v180
    %205 = vmatprep.subr.bf16.mxu0 0
    %206 = vmatpush1.bf16.msra.mxu0 0
    %207 = vmatprep.subr.bf16.mxu0 0
    %208 = vmatpush1.bf16.msra.mxu0 0
    %209 = vmatprep.subr.bf16.mxu0 0
    %210 = vmatpush1.bf16.msra.mxu0 0
    %211 = vmatprep.subr.bf16.mxu0 0
    %212 = vmatpush1.bf16.msra.mxu0 0
    %213 = vmatprep.subr.bf16.mxu0 0
    %214 = vmatpush1.bf16.msra.mxu0 0
    %215 = vmatprep.subr.bf16.mxu0 0
    %216 = vmatpush1.bf16.msra.mxu0 0
    %217 = vmatprep.subr.bf16.mxu0 0
    %218 = vmatpush1.bf16.msra.mxu0 0
    %219 = vmatprep.subr.bf16.mxu0 0
    %220 = vmatpush1.bf16.msra.mxu0 0
    %221 = vmatprep.mubr.bf16.mxu0 0
    %222 = vmatmul.mubr.bf16.gmra.mrb[0].mxu0 %v117
    %v223 = vpop.f32.mrb[0].mxu0
    %v224 = vadd.f32 %v139, %v223
    %v225 = vpop.f32.mrb[0].mxu0
    %v226 = vpop.f32.mrb[0].mxu0
    %v227 = vpop.f32.mrb[0].mxu0
    %228 = vdwg.mxu0
    %v229 = vmax.f32 %v224, 0.0
    %v230 = vld [vmem:[%s6] sm:$0x1]
    %v232 = vlaneseq
    %v233 = vshrl.u32 %v232, 7
    %v234 = vsub.s32 0, %v233
    %v235 = vrot.slane %v230, %v234
    %v237 = vmul.f32 %v229, %v235
    %238 = vadd.xlane.f32.xlu0 %v237
    %v239 = vpop.xlane.xlu0 %238
    %s240 = sld [smem:[#allocation3]]
    %v241 = vstv %s240
    %v242 = vadd.f32 %v239, %v241
    %vm243 = vcmask 7168
    %244 = vst.msk [vmem:[%s8] sm:$0xff] %vm243, %v242
    // Predicated region
    $region38: #{tpu_custom_call.1} parent=1 // pred_check
      _
    $region39: #{tpu_custom_call.1} parent=1 // pred_check_branch
      %246 = sbr.rel (0) target = $region41
    $region40: #{tpu_custom_call.1} parent=1 // pred_region
      _
    $region41: #{tpu_custom_call.1} parent=1 // pred_fallthru
      _
    // Predicated region
    $region42: #{tpu_custom_call.1} parent=1 // pred_check
      _
    $region43: #{tpu_custom_call.1} parent=1 // pred_check_branch
      %248 = sbr.rel (0) target = $region45
    $region44: #{tpu_custom_call.1} parent=1 // pred_region
      _
    $region45: #{tpu_custom_call.1} parent=1 // pred_fallthru
      _
    %249 = vsyncpa [#allocation5], 1

</llo_original>
